<compile_context>
chip_gen: v5e
topology: v5e:2x2
jax: 0.10.0
libtpu: 0.0.40
codegen_flags: <defaults>
</compile_context>

<pallas_src>
import functools

import jax
import jax.numpy as jnp
from jax import lax
from jax.experimental import pallas as pl
from jax.experimental.pallas import tpu as pltpu
import numpy as np

EPS = 1e-5


def smooth_block_kernel(x_ref, p_ref, o_ref, *, W):
    # x_ref / o_ref: (BN, C, HW) blocks, p_ref: (C, 24) packed parameters.
    BN, C, HW = x_ref.shape

    p = p_ref[...].astype(jnp.float32)                     # (C, 24)
    w1, b1, g1, bt1 = p[:, 0:9], p[:, 9:10], p[:, 10:11], p[:, 11:12]
    w2, b2, g2, bt2 = p[:, 12:21], p[:, 21:22], p[:, 22:23], p[:, 23:24]

    # Flat-spatial edge masks (computed once, reused for every sample / layer).
    pos = lax.broadcasted_iota(jnp.int32, (C, HW), 1)
    col = pos % W
    row0 = pos < W                  # h == 0
    rowl = pos >= (HW - W)          # h == H-1
    col0 = col == 0                 # w == 0
    coll = col == (W - 1)           # w == W-1

    inv_n = 1.0 / float(C * HW)

    def taps9(y):
        # 9 shifted copies of y (C, HW) implementing a 1-px reflection pad,
        # in (dy, dx) row-major order.  pltpu.roll(v, s)[i] == v[i - s].
        up = pltpu.roll(y, W, 1)            # y[i - W]  (row above)
        dn = pltpu.roll(y, HW - W, 1)       # y[i + W]  (row below)
        r_up = jnp.where(row0, dn, up)      # dy = -1, reflected at h == 0
        r_dn = jnp.where(rowl, up, dn)      # dy = +1, reflected at h == H-1
        out = []
        for r in (r_up, y, r_dn):
            lft = pltpu.roll(r, 1, 1)        # r[i - 1]
            rgt = pltpu.roll(r, HW - 1, 1)   # r[i + 1]
            out.append(jnp.where(col0, rgt, lft))   # dx = -1
            out.append(r)                            # dx =  0
            out.append(jnp.where(coll, lft, rgt))   # dx = +1
        return out

    def dwconv(y, w9, bias):
        # Depthwise 3x3 conv: w9 (C, 9) tap weights, bias (C, 1).
        t = taps9(y)
        prods = [t[k] * w9[:, k:k + 1] for k in range(9)]
        s = (((prods[0] + prods[1]) + (prods[2] + prods[3]))
             + ((prods[4] + prods[5]) + (prods[6] + prods[7]))
             + (prods[8] + bias))
        return s

    def groupnorm(y, gamma, beta):
        # GroupNorm(num_groups=1): stats over all of (C, HW), affine folded in.
        s1 = jnp.sum(y)
        s2 = jnp.sum(y * y)
        mean = s1 * inv_n
        var = s2 * inv_n - mean * mean
        inv_std = lax.rsqrt(var + EPS)
        scale = gamma * inv_std             # (C, 1)
        shift = beta - mean * scale         # (C, 1)
        return y * scale + shift

    # Static unroll over the (small) per-block batch; each sample's math is
    # lane-dense 2-D (C, HW) work.
    for b in range(BN):
        x = x_ref[b].astype(jnp.float32)    # (C, HW)
        h = dwconv(x, w1, b1)
        h = groupnorm(h, g1, bt1)
        h = jnp.maximum(h, 0.0)             # ReLU
        h = dwconv(h, w2, b2)
        h = groupnorm(h, g2, bt2)
        o_ref[b] = (x + h).astype(o_ref.dtype)   # residual add


def _pack_params(params):
    (w1, b1, g1, bt1, w2, b2, g2, bt2) = params
    C = w1.shape[0]
    cols = [w1.reshape(C, 9), b1.reshape(C, 1), g1.reshape(C, 1),
            bt1.reshape(C, 1),
            w2.reshape(C, 9), b2.reshape(C, 1), g2.reshape(C, 1),
            bt2.reshape(C, 1)]
    return jnp.concatenate(cols, axis=1).astype(jnp.float32)   # (C, 24)


def _pick_batch_block(N, C, HW, itemsize, target_bytes=1 << 20, max_unroll=8):
    per_sample = max(1, C * HW * itemsize)
    bn = max(1, min(N, max_unroll, target_bytes // per_sample))
    while N % bn:
        bn -= 1
    # If everything landed in a single grid step but split blocks would still
    # be decently sized, split so both v7x TensorCores get work.
    if N // bn == 1 and N > 1 and per_sample * (N // 2) >= (256 << 10):
        for cand in range(N // 2, 0, -1):
            if N % cand == 0:
                bn = cand
                break
    return bn


def smooth_block(x, params, *, batch_block=None):
    # x: (N, C, H, W); reflection pad of 1 requires H, W >= 2.
    N, C, H, W = x.shape
    HW = H * W
    x2 = x.reshape(N, C, HW)        # lane-dense layout plumbing (free in HBM)
    p = _pack_params(params)

    bn = batch_block or _pick_batch_block(N, C, HW, jnp.dtype(x.dtype).itemsize)
    assert N % bn == 0

    # TODO(synk): for very large (C, H, W) that would exceed v7x's 64 MiB VMEM,
    # additionally tile over C (depthwise conv is per-channel) with a two-pass
    # GroupNorm; not needed at these shapes.
    out = pl.pallas_call(
        functools.partial(smooth_block_kernel, W=W),
        out_shape=jax.ShapeDtypeStruct((N, C, HW), x.dtype),
        grid_spec=pltpu.PrefetchScalarGridSpec(
            num_scalar_prefetch=0,
            grid=(N // bn,),
            in_specs=[
                pl.BlockSpec((bn, C, HW), lambda n: (n, 0, 0)),
                pl.BlockSpec((C, 24), lambda n: (0, 0)),
            ],
            out_specs=pl.BlockSpec((bn, C, HW), lambda n: (n, 0, 0)),
        ),
        compiler_params=pltpu.CompilerParams(
            dimension_semantics=("parallel",),
            vmem_limit_bytes=32 * 1024 * 1024),
    )(x2, p)
    return out.reshape(N, C, H, W)


def smooth_block_ref(x, params):
    # Pure-JAX reference mirroring the PyTorch module exactly.
    N, C, H, W = x.shape
    (w1, b1, g1, bt1, w2, b2, g2, bt2) = params

    def layer(h, w, b, g, bt):
        hp = jnp.pad(h, ((0, 0), (0, 0), (1, 1), (1, 1)), mode="reflect")
        y = lax.conv_general_dilated(
            hp, w.reshape(C, 1, 3, 3), (1, 1), "VALID",
            dimension_numbers=("NCHW", "OIHW", "NCHW"),
            feature_group_count=C)
        y = y + b.reshape(1, C, 1, 1)
        mean = y.mean(axis=(1, 2, 3), keepdims=True)
        var = ((y - mean) ** 2).mean(axis=(1, 2, 3), keepdims=True)
        yn = (y - mean) / jnp.sqrt(var + EPS)
        return yn * g.reshape(1, C, 1, 1) + bt.reshape(1, C, 1, 1)

    h = layer(x, w1, b1, g1, bt1)
    h = jnp.maximum(h, 0.0)
    h = layer(h, w2, b2, g2, bt2)
    return x + h


def init_params(key, C):
    k1, k2, k3, k4 = jax.random.split(key, 4)
    w1 = jax.random.normal(k1, (C, 3, 3), jnp.float32) * 0.2
    b1 = jax.random.normal(k2, (C, 1, 1), jnp.float32) * 0.05
    w2 = jax.random.normal(k3, (C, 3, 3), jnp.float32) * 0.2
    b2 = jax.random.normal(k4, (C, 1, 1), jnp.float32) * 0.05
    # GroupNorm affine: PyTorch default init (gamma=1, beta=0).
    g1 = jnp.ones((C, 1, 1), jnp.float32)
    bt1 = jnp.zeros((C, 1, 1), jnp.float32)
    g2 = jnp.ones((C, 1, 1), jnp.float32)
    bt2 = jnp.zeros((C, 1, 1), jnp.float32)
    return (w1, b1, g1, bt1, w2, b2, g2, bt2)


if __name__ == "__main__":
    N, C, H, W = 2, 4, 16, 16
    key = jax.random.PRNGKey(0)
    kx, kp = jax.random.split(key)
    x = jax.random.normal(kx, (N, C, H, W), jnp.float32)
    params = init_params(kp, C)

    out = jax.block_until_ready(smooth_block(x, params))
    ref = jax.block_until_ready(smooth_block_ref(x, params))
    np.testing.assert_allclose(np.asarray(out), np.asarray(ref),
                               rtol=1e-4, atol=1e-4)
    print("KERNEL_OK")
</pallas_src>

<mosaic_0001>
module attributes {stable_mosaic.version = 11 : i64} {
  func.func @smooth_block_kernel(%arg0: i32, %arg1: memref<2x4x256xf32, #tpu.memory_space<vmem>>, %arg2: memref<4x24xf32, #tpu.memory_space<vmem>>, %arg3: memref<2x4x256xf32, #tpu.memory_space<vmem>>) attributes {dimension_semantics = [#tpu.dimension_semantics<parallel>], iteration_bounds = array<i64: 1>, scalar_prefetch = 0 : i64, scratch_operands = 0 : i64, tpu.core_type = #tpu.core_type<tc>, window_params = [{transform_indices = @transform_0, window_bounds = array<i64: 2, 4, 256>}, {pipeline_mode = #tpu.pipeline_mode<synchronous>, transform_indices = @transform_1, window_bounds = array<i64: 4, 24>}, {transform_indices = @transform_2, window_bounds = array<i64: 2, 4, 256>}]} {
    %c0 = arith.constant 0 : index
    %c0_0 = arith.constant 0 : index
    %0 = vector.load %arg2[%c0, %c0_0] : memref<4x24xf32, #tpu.memory_space<vmem>>, vector<4x24xf32>
    %1 = vector.extract_strided_slice %0 {offsets = [0, 0], sizes = [4, 9], strides = [1, 1]} : vector<4x24xf32> to vector<4x9xf32>
    %2 = vector.extract_strided_slice %0 {offsets = [0, 9], sizes = [4, 1], strides = [1, 1]} : vector<4x24xf32> to vector<4x1xf32>
    %3 = vector.extract_strided_slice %0 {offsets = [0, 10], sizes = [4, 1], strides = [1, 1]} : vector<4x24xf32> to vector<4x1xf32>
    %4 = vector.extract_strided_slice %0 {offsets = [0, 11], sizes = [4, 1], strides = [1, 1]} : vector<4x24xf32> to vector<4x1xf32>
    %5 = vector.extract_strided_slice %0 {offsets = [0, 12], sizes = [4, 9], strides = [1, 1]} : vector<4x24xf32> to vector<4x9xf32>
    %6 = vector.extract_strided_slice %0 {offsets = [0, 21], sizes = [4, 1], strides = [1, 1]} : vector<4x24xf32> to vector<4x1xf32>
    %7 = vector.extract_strided_slice %0 {offsets = [0, 22], sizes = [4, 1], strides = [1, 1]} : vector<4x24xf32> to vector<4x1xf32>
    %8 = vector.extract_strided_slice %0 {offsets = [0, 23], sizes = [4, 1], strides = [1, 1]} : vector<4x24xf32> to vector<4x1xf32>
    %9 = tpu.iota {dimensions = array<i32: 1>} : vector<4x256xi32>
    %c16_i32 = arith.constant 16 : i32
    %c0_i32 = arith.constant 0 : i32
    %10 = arith.cmpi eq, %c16_i32, %c0_i32 : i32
    %c1_i32 = arith.constant 1 : i32
    %11 = arith.select %10, %c1_i32, %c16_i32 : i32
    %12 = vector.broadcast %11 : i32 to vector<4x256xi32>
    %13 = arith.remsi %9, %12 : vector<4x256xi32>
    %c0_i32_1 = arith.constant 0 : i32
    %14 = vector.broadcast %c0_i32_1 : i32 to vector<4x256xi32>
    %15 = arith.cmpi ne, %13, %14 : vector<4x256xi32>
    %c0_i32_2 = arith.constant 0 : i32
    %16 = vector.broadcast %c0_i32_2 : i32 to vector<4x256xi32>
    %17 = arith.cmpi slt, %13, %16 : vector<4x256xi32>
    %c0_i32_3 = arith.constant 0 : i32
    %18 = arith.cmpi slt, %11, %c0_i32_3 : i32
    %19 = vector.broadcast %18 : i1 to vector<4x256xi1>
    %20 = vector.broadcast %19 : vector<4x256xi1> to vector<4x256xi1>
    %21 = arith.xori %17, %20 : vector<4x256xi1>
    %22 = arith.andi %21, %15 : vector<4x256xi1>
    %23 = vector.broadcast %11 : i32 to vector<4x256xi32>
    %24 = arith.addi %13, %23 : vector<4x256xi32>
    %25 = arith.select %22, %24, %13 : vector<4x256xi1>, vector<4x256xi32>
    %c16_i32_4 = arith.constant 16 : i32
    %26 = vector.broadcast %c16_i32_4 : i32 to vector<4x256xi32>
    %27 = arith.cmpi slt, %9, %26 : vector<4x256xi32>
    %c240_i32 = arith.constant 240 : i32
    %28 = vector.broadcast %c240_i32 : i32 to vector<4x256xi32>
    %29 = arith.cmpi sge, %9, %28 : vector<4x256xi32>
    %c0_i32_5 = arith.constant 0 : i32
    %30 = vector.broadcast %c0_i32_5 : i32 to vector<4x256xi32>
    %31 = arith.cmpi eq, %25, %30 : vector<4x256xi32>
    %c15_i32 = arith.constant 15 : i32
    %32 = vector.broadcast %c15_i32 : i32 to vector<4x256xi32>
    %33 = arith.cmpi eq, %25, %32 : vector<4x256xi32>
    %c0_6 = arith.constant 0 : index
    %c0_7 = arith.constant 0 : index
    %c0_8 = arith.constant 0 : index
    %34 = vector.load %arg1[%c0_6, %c0_7, %c0_8] : memref<2x4x256xf32, #tpu.memory_space<vmem>>, vector<1x4x256xf32>
    %35 = vector.shape_cast %34 : vector<1x4x256xf32> to vector<4x256xf32>
    %c16_i32_9 = arith.constant 16 : i32
    %36 = tpu.dynamic_rotate %35 by %c16_i32_9 dim 1 : vector<4x256xf32>, i32 -> vector<4x256xf32>
    %c240_i32_10 = arith.constant 240 : i32
    %37 = tpu.dynamic_rotate %35 by %c240_i32_10 dim 1 : vector<4x256xf32>, i32 -> vector<4x256xf32>
    %38 = arith.select %27, %37, %36 : vector<4x256xi1>, vector<4x256xf32>
    %39 = arith.select %29, %36, %37 : vector<4x256xi1>, vector<4x256xf32>
    %c1_i32_11 = arith.constant 1 : i32
    %40 = tpu.dynamic_rotate %38 by %c1_i32_11 dim 1 : vector<4x256xf32>, i32 -> vector<4x256xf32>
    %c255_i32 = arith.constant 255 : i32
    %41 = tpu.dynamic_rotate %38 by %c255_i32 dim 1 : vector<4x256xf32>, i32 -> vector<4x256xf32>
    %42 = arith.select %31, %41, %40 : vector<4x256xi1>, vector<4x256xf32>
    %43 = arith.select %33, %40, %41 : vector<4x256xi1>, vector<4x256xf32>
    %c1_i32_12 = arith.constant 1 : i32
    %44 = tpu.dynamic_rotate %35 by %c1_i32_12 dim 1 : vector<4x256xf32>, i32 -> vector<4x256xf32>
    %c255_i32_13 = arith.constant 255 : i32
    %45 = tpu.dynamic_rotate %35 by %c255_i32_13 dim 1 : vector<4x256xf32>, i32 -> vector<4x256xf32>
    %46 = arith.select %31, %45, %44 : vector<4x256xi1>, vector<4x256xf32>
    %47 = arith.select %33, %44, %45 : vector<4x256xi1>, vector<4x256xf32>
    %c1_i32_14 = arith.constant 1 : i32
    %48 = tpu.dynamic_rotate %39 by %c1_i32_14 dim 1 : vector<4x256xf32>, i32 -> vector<4x256xf32>
    %c255_i32_15 = arith.constant 255 : i32
    %49 = tpu.dynamic_rotate %39 by %c255_i32_15 dim 1 : vector<4x256xf32>, i32 -> vector<4x256xf32>
    %50 = arith.select %31, %49, %48 : vector<4x256xi1>, vector<4x256xf32>
    %51 = arith.select %33, %48, %49 : vector<4x256xi1>, vector<4x256xf32>
    %52 = vector.extract_strided_slice %1 {offsets = [0, 0], sizes = [4, 1], strides = [1, 1]} : vector<4x9xf32> to vector<4x1xf32>
    %53 = vector.broadcast %52 : vector<4x1xf32> to vector<4x256xf32>
    %54 = arith.mulf %42, %53 : vector<4x256xf32>
    %55 = vector.extract_strided_slice %1 {offsets = [0, 1], sizes = [4, 1], strides = [1, 1]} : vector<4x9xf32> to vector<4x1xf32>
    %56 = vector.broadcast %55 : vector<4x1xf32> to vector<4x256xf32>
    %57 = arith.mulf %38, %56 : vector<4x256xf32>
    %58 = vector.extract_strided_slice %1 {offsets = [0, 2], sizes = [4, 1], strides = [1, 1]} : vector<4x9xf32> to vector<4x1xf32>
    %59 = vector.broadcast %58 : vector<4x1xf32> to vector<4x256xf32>
    %60 = arith.mulf %43, %59 : vector<4x256xf32>
    %61 = vector.extract_strided_slice %1 {offsets = [0, 3], sizes = [4, 1], strides = [1, 1]} : vector<4x9xf32> to vector<4x1xf32>
    %62 = vector.broadcast %61 : vector<4x1xf32> to vector<4x256xf32>
    %63 = arith.mulf %46, %62 : vector<4x256xf32>
    %64 = vector.extract_strided_slice %1 {offsets = [0, 4], sizes = [4, 1], strides = [1, 1]} : vector<4x9xf32> to vector<4x1xf32>
    %65 = vector.broadcast %64 : vector<4x1xf32> to vector<4x256xf32>
    %66 = arith.mulf %35, %65 : vector<4x256xf32>
    %67 = vector.extract_strided_slice %1 {offsets = [0, 5], sizes = [4, 1], strides = [1, 1]} : vector<4x9xf32> to vector<4x1xf32>
    %68 = vector.broadcast %67 : vector<4x1xf32> to vector<4x256xf32>
    %69 = arith.mulf %47, %68 : vector<4x256xf32>
    %70 = vector.extract_strided_slice %1 {offsets = [0, 6], sizes = [4, 1], strides = [1, 1]} : vector<4x9xf32> to vector<4x1xf32>
    %71 = vector.broadcast %70 : vector<4x1xf32> to vector<4x256xf32>
    %72 = arith.mulf %50, %71 : vector<4x256xf32>
    %73 = vector.extract_strided_slice %1 {offsets = [0, 7], sizes = [4, 1], strides = [1, 1]} : vector<4x9xf32> to vector<4x1xf32>
    %74 = vector.broadcast %73 : vector<4x1xf32> to vector<4x256xf32>
    %75 = arith.mulf %39, %74 : vector<4x256xf32>
    %76 = vector.extract_strided_slice %1 {offsets = [0, 8], sizes = [4, 1], strides = [1, 1]} : vector<4x9xf32> to vector<4x1xf32>
    %77 = vector.broadcast %76 : vector<4x1xf32> to vector<4x256xf32>
    %78 = arith.mulf %51, %77 : vector<4x256xf32>
    %79 = arith.addf %54, %57 : vector<4x256xf32>
    %80 = arith.addf %60, %63 : vector<4x256xf32>
    %81 = arith.addf %79, %80 : vector<4x256xf32>
    %82 = arith.addf %66, %69 : vector<4x256xf32>
    %83 = arith.addf %72, %75 : vector<4x256xf32>
    %84 = arith.addf %82, %83 : vector<4x256xf32>
    %85 = arith.addf %81, %84 : vector<4x256xf32>
    %86 = vector.broadcast %2 : vector<4x1xf32> to vector<4x256xf32>
    %87 = arith.addf %78, %86 : vector<4x256xf32>
    %88 = arith.addf %85, %87 : vector<4x256xf32>
    %89 = vector.shape_cast %88 : vector<4x256xf32> to vector<1x4x256xf32>
    %cst = arith.constant dense<0.000000e+00> : vector<1xf32>
    %90 = vector.multi_reduction <add>, %89, %cst [1, 2] : vector<1x4x256xf32> to vector<1xf32>
    %91 = vector.shape_cast %90 : vector<1xf32> to vector<1x1x1xf32>
    %92 = vector.extract %91[0, 0, 0] : f32 from vector<1x1x1xf32>
    %93 = arith.mulf %88, %88 : vector<4x256xf32>
    %94 = vector.shape_cast %93 : vector<4x256xf32> to vector<1x4x256xf32>
    %cst_16 = arith.constant dense<0.000000e+00> : vector<1xf32>
    %95 = vector.multi_reduction <add>, %94, %cst_16 [1, 2] : vector<1x4x256xf32> to vector<1xf32>
    %96 = vector.shape_cast %95 : vector<1xf32> to vector<1x1x1xf32>
    %97 = vector.extract %96[0, 0, 0] : f32 from vector<1x1x1xf32>
    %cst_17 = arith.constant 9.765625E-4 : f32
    %98 = arith.mulf %92, %cst_17 : f32
    %cst_18 = arith.constant 9.765625E-4 : f32
    %99 = arith.mulf %97, %cst_18 : f32
    %100 = arith.mulf %98, %98 : f32
    %101 = arith.subf %99, %100 : f32
    %cst_19 = arith.constant 9.99999974E-6 : f32
    %102 = arith.addf %101, %cst_19 : f32
    %103 = math.rsqrt %102 : f32
    %104 = vector.broadcast %103 : f32 to vector<4x1xf32>
    %105 = arith.mulf %3, %104 : vector<4x1xf32>
    %106 = vector.broadcast %98 : f32 to vector<4x1xf32>
    %107 = arith.mulf %106, %105 : vector<4x1xf32>
    %108 = arith.subf %4, %107 : vector<4x1xf32>
    %109 = vector.broadcast %105 : vector<4x1xf32> to vector<4x256xf32>
    %110 = arith.mulf %88, %109 : vector<4x256xf32>
    %111 = vector.broadcast %108 : vector<4x1xf32> to vector<4x256xf32>
    %112 = arith.addf %110, %111 : vector<4x256xf32>
    %cst_20 = arith.constant 0.000000e+00 : f32
    %113 = vector.broadcast %cst_20 : f32 to vector<4x256xf32>
    %114 = arith.maximumf %112, %113 : vector<4x256xf32>
    %c16_i32_21 = arith.constant 16 : i32
    %115 = tpu.dynamic_rotate %114 by %c16_i32_21 dim 1 : vector<4x256xf32>, i32 -> vector<4x256xf32>
    %c240_i32_22 = arith.constant 240 : i32
    %116 = tpu.dynamic_rotate %114 by %c240_i32_22 dim 1 : vector<4x256xf32>, i32 -> vector<4x256xf32>
    %117 = arith.select %27, %116, %115 : vector<4x256xi1>, vector<4x256xf32>
    %118 = arith.select %29, %115, %116 : vector<4x256xi1>, vector<4x256xf32>
    %c1_i32_23 = arith.constant 1 : i32
    %119 = tpu.dynamic_rotate %117 by %c1_i32_23 dim 1 : vector<4x256xf32>, i32 -> vector<4x256xf32>
    %c255_i32_24 = arith.constant 255 : i32
    %120 = tpu.dynamic_rotate %117 by %c255_i32_24 dim 1 : vector<4x256xf32>, i32 -> vector<4x256xf32>
    %121 = arith.select %31, %120, %119 : vector<4x256xi1>, vector<4x256xf32>
    %122 = arith.select %33, %119, %120 : vector<4x256xi1>, vector<4x256xf32>
    %c1_i32_25 = arith.constant 1 : i32
    %123 = tpu.dynamic_rotate %114 by %c1_i32_25 dim 1 : vector<4x256xf32>, i32 -> vector<4x256xf32>
    %c255_i32_26 = arith.constant 255 : i32
    %124 = tpu.dynamic_rotate %114 by %c255_i32_26 dim 1 : vector<4x256xf32>, i32 -> vector<4x256xf32>
    %125 = arith.select %31, %124, %123 : vector<4x256xi1>, vector<4x256xf32>
    %126 = arith.select %33, %123, %124 : vector<4x256xi1>, vector<4x256xf32>
    %c1_i32_27 = arith.constant 1 : i32
    %127 = tpu.dynamic_rotate %118 by %c1_i32_27 dim 1 : vector<4x256xf32>, i32 -> vector<4x256xf32>
    %c255_i32_28 = arith.constant 255 : i32
    %128 = tpu.dynamic_rotate %118 by %c255_i32_28 dim 1 : vector<4x256xf32>, i32 -> vector<4x256xf32>
    %129 = arith.select %31, %128, %127 : vector<4x256xi1>, vector<4x256xf32>
    %130 = arith.select %33, %127, %128 : vector<4x256xi1>, vector<4x256xf32>
    %131 = vector.extract_strided_slice %5 {offsets = [0, 0], sizes = [4, 1], strides = [1, 1]} : vector<4x9xf32> to vector<4x1xf32>
    %132 = vector.broadcast %131 : vector<4x1xf32> to vector<4x256xf32>
    %133 = arith.mulf %121, %132 : vector<4x256xf32>
    %134 = vector.extract_strided_slice %5 {offsets = [0, 1], sizes = [4, 1], strides = [1, 1]} : vector<4x9xf32> to vector<4x1xf32>
    %135 = vector.broadcast %134 : vector<4x1xf32> to vector<4x256xf32>
    %136 = arith.mulf %117, %135 : vector<4x256xf32>
    %137 = vector.extract_strided_slice %5 {offsets = [0, 2], sizes = [4, 1], strides = [1, 1]} : vector<4x9xf32> to vector<4x1xf32>
    %138 = vector.broadcast %137 : vector<4x1xf32> to vector<4x256xf32>
    %139 = arith.mulf %122, %138 : vector<4x256xf32>
    %140 = vector.extract_strided_slice %5 {offsets = [0, 3], sizes = [4, 1], strides = [1, 1]} : vector<4x9xf32> to vector<4x1xf32>
    %141 = vector.broadcast %140 : vector<4x1xf32> to vector<4x256xf32>
    %142 = arith.mulf %125, %141 : vector<4x256xf32>
    %143 = vector.extract_strided_slice %5 {offsets = [0, 4], sizes = [4, 1], strides = [1, 1]} : vector<4x9xf32> to vector<4x1xf32>
    %144 = vector.broadcast %143 : vector<4x1xf32> to vector<4x256xf32>
    %145 = arith.mulf %114, %144 : vector<4x256xf32>
    %146 = vector.extract_strided_slice %5 {offsets = [0, 5], sizes = [4, 1], strides = [1, 1]} : vector<4x9xf32> to vector<4x1xf32>
    %147 = vector.broadcast %146 : vector<4x1xf32> to vector<4x256xf32>
    %148 = arith.mulf %126, %147 : vector<4x256xf32>
    %149 = vector.extract_strided_slice %5 {offsets = [0, 6], sizes = [4, 1], strides = [1, 1]} : vector<4x9xf32> to vector<4x1xf32>
    %150 = vector.broadcast %149 : vector<4x1xf32> to vector<4x256xf32>
    %151 = arith.mulf %129, %150 : vector<4x256xf32>
    %152 = vector.extract_strided_slice %5 {offsets = [0, 7], sizes = [4, 1], strides = [1, 1]} : vector<4x9xf32> to vector<4x1xf32>
    %153 = vector.broadcast %152 : vector<4x1xf32> to vector<4x256xf32>
    %154 = arith.mulf %118, %153 : vector<4x256xf32>
    %155 = vector.extract_strided_slice %5 {offsets = [0, 8], sizes = [4, 1], strides = [1, 1]} : vector<4x9xf32> to vector<4x1xf32>
    %156 = vector.broadcast %155 : vector<4x1xf32> to vector<4x256xf32>
    %157 = arith.mulf %130, %156 : vector<4x256xf32>
    %158 = arith.addf %133, %136 : vector<4x256xf32>
    %159 = arith.addf %139, %142 : vector<4x256xf32>
    %160 = arith.addf %158, %159 : vector<4x256xf32>
    %161 = arith.addf %145, %148 : vector<4x256xf32>
    %162 = arith.addf %151, %154 : vector<4x256xf32>
    %163 = arith.addf %161, %162 : vector<4x256xf32>
    %164 = arith.addf %160, %163 : vector<4x256xf32>
    %165 = vector.broadcast %6 : vector<4x1xf32> to vector<4x256xf32>
    %166 = arith.addf %157, %165 : vector<4x256xf32>
    %167 = arith.addf %164, %166 : vector<4x256xf32>
    %168 = vector.shape_cast %167 : vector<4x256xf32> to vector<1x4x256xf32>
    %cst_29 = arith.constant dense<0.000000e+00> : vector<1xf32>
    %169 = vector.multi_reduction <add>, %168, %cst_29 [1, 2] : vector<1x4x256xf32> to vector<1xf32>
    %170 = vector.shape_cast %169 : vector<1xf32> to vector<1x1x1xf32>
    %171 = vector.extract %170[0, 0, 0] : f32 from vector<1x1x1xf32>
    %172 = arith.mulf %167, %167 : vector<4x256xf32>
    %173 = vector.shape_cast %172 : vector<4x256xf32> to vector<1x4x256xf32>
    %cst_30 = arith.constant dense<0.000000e+00> : vector<1xf32>
    %174 = vector.multi_reduction <add>, %173, %cst_30 [1, 2] : vector<1x4x256xf32> to vector<1xf32>
    %175 = vector.shape_cast %174 : vector<1xf32> to vector<1x1x1xf32>
    %176 = vector.extract %175[0, 0, 0] : f32 from vector<1x1x1xf32>
    %cst_31 = arith.constant 9.765625E-4 : f32
    %177 = arith.mulf %171, %cst_31 : f32
    %cst_32 = arith.constant 9.765625E-4 : f32
    %178 = arith.mulf %176, %cst_32 : f32
    %179 = arith.mulf %177, %177 : f32
    %180 = arith.subf %178, %179 : f32
    %cst_33 = arith.constant 9.99999974E-6 : f32
    %181 = arith.addf %180, %cst_33 : f32
    %182 = math.rsqrt %181 : f32
    %183 = vector.broadcast %182 : f32 to vector<4x1xf32>
    %184 = arith.mulf %7, %183 : vector<4x1xf32>
    %185 = vector.broadcast %177 : f32 to vector<4x1xf32>
    %186 = arith.mulf %185, %184 : vector<4x1xf32>
    %187 = arith.subf %8, %186 : vector<4x1xf32>
    %188 = vector.broadcast %184 : vector<4x1xf32> to vector<4x256xf32>
    %189 = arith.mulf %167, %188 : vector<4x256xf32>
    %190 = vector.broadcast %187 : vector<4x1xf32> to vector<4x256xf32>
    %191 = arith.addf %189, %190 : vector<4x256xf32>
    %192 = arith.addf %35, %191 : vector<4x256xf32>
    %c0_34 = arith.constant 0 : index
    %c0_35 = arith.constant 0 : index
    %c0_36 = arith.constant 0 : index
    %193 = vector.load %arg3[%c0_34, %c0_35, %c0_36] : memref<2x4x256xf32, #tpu.memory_space<vmem>>, vector<1x4x256xf32>
    %194 = vector.shape_cast %193 : vector<1x4x256xf32> to vector<4x256xf32>
    %195 = vector.shape_cast %192 : vector<4x256xf32> to vector<1x4x256xf32>
    tpu.vector_store %arg3[%c0_34, %c0_35, %c0_36], %195 {strides = array<i32>} : memref<2x4x256xf32, #tpu.memory_space<vmem>>, vector<1x4x256xf32>,
    %c1 = arith.constant 1 : index
    %c0_37 = arith.constant 0 : index
    %c0_38 = arith.constant 0 : index
    %196 = vector.load %arg1[%c1, %c0_37, %c0_38] : memref<2x4x256xf32, #tpu.memory_space<vmem>>, vector<1x4x256xf32>
    %197 = vector.shape_cast %196 : vector<1x4x256xf32> to vector<4x256xf32>
    %c16_i32_39 = arith.constant 16 : i32
    %198 = tpu.dynamic_rotate %197 by %c16_i32_39 dim 1 : vector<4x256xf32>, i32 -> vector<4x256xf32>
    %c240_i32_40 = arith.constant 240 : i32
    %199 = tpu.dynamic_rotate %197 by %c240_i32_40 dim 1 : vector<4x256xf32>, i32 -> vector<4x256xf32>
    %200 = arith.select %27, %199, %198 : vector<4x256xi1>, vector<4x256xf32>
    %201 = arith.select %29, %198, %199 : vector<4x256xi1>, vector<4x256xf32>
    %c1_i32_41 = arith.constant 1 : i32
    %202 = tpu.dynamic_rotate %200 by %c1_i32_41 dim 1 : vector<4x256xf32>, i32 -> vector<4x256xf32>
    %c255_i32_42 = arith.constant 255 : i32
    %203 = tpu.dynamic_rotate %200 by %c255_i32_42 dim 1 : vector<4x256xf32>, i32 -> vector<4x256xf32>
    %204 = arith.select %31, %203, %202 : vector<4x256xi1>, vector<4x256xf32>
    %205 = arith.select %33, %202, %203 : vector<4x256xi1>, vector<4x256xf32>
    %c1_i32_43 = arith.constant 1 : i32
    %206 = tpu.dynamic_rotate %197 by %c1_i32_43 dim 1 : vector<4x256xf32>, i32 -> vector<4x256xf32>
    %c255_i32_44 = arith.constant 255 : i32
    %207 = tpu.dynamic_rotate %197 by %c255_i32_44 dim 1 : vector<4x256xf32>, i32 -> vector<4x256xf32>
    %208 = arith.select %31, %207, %206 : vector<4x256xi1>, vector<4x256xf32>
    %209 = arith.select %33, %206, %207 : vector<4x256xi1>, vector<4x256xf32>
    %c1_i32_45 = arith.constant 1 : i32
    %210 = tpu.dynamic_rotate %201 by %c1_i32_45 dim 1 : vector<4x256xf32>, i32 -> vector<4x256xf32>
    %c255_i32_46 = arith.constant 255 : i32
    %211 = tpu.dynamic_rotate %201 by %c255_i32_46 dim 1 : vector<4x256xf32>, i32 -> vector<4x256xf32>
    %212 = arith.select %31, %211, %210 : vector<4x256xi1>, vector<4x256xf32>
    %213 = arith.select %33, %210, %211 : vector<4x256xi1>, vector<4x256xf32>
    %214 = vector.extract_strided_slice %1 {offsets = [0, 0], sizes = [4, 1], strides = [1, 1]} : vector<4x9xf32> to vector<4x1xf32>
    %215 = vector.broadcast %214 : vector<4x1xf32> to vector<4x256xf32>
    %216 = arith.mulf %204, %215 : vector<4x256xf32>
    %217 = vector.extract_strided_slice %1 {offsets = [0, 1], sizes = [4, 1], strides = [1, 1]} : vector<4x9xf32> to vector<4x1xf32>
    %218 = vector.broadcast %217 : vector<4x1xf32> to vector<4x256xf32>
    %219 = arith.mulf %200, %218 : vector<4x256xf32>
    %220 = vector.extract_strided_slice %1 {offsets = [0, 2], sizes = [4, 1], strides = [1, 1]} : vector<4x9xf32> to vector<4x1xf32>
    %221 = vector.broadcast %220 : vector<4x1xf32> to vector<4x256xf32>
    %222 = arith.mulf %205, %221 : vector<4x256xf32>
    %223 = vector.extract_strided_slice %1 {offsets = [0, 3], sizes = [4, 1], strides = [1, 1]} : vector<4x9xf32> to vector<4x1xf32>
    %224 = vector.broadcast %223 : vector<4x1xf32> to vector<4x256xf32>
    %225 = arith.mulf %208, %224 : vector<4x256xf32>
    %226 = vector.extract_strided_slice %1 {offsets = [0, 4], sizes = [4, 1], strides = [1, 1]} : vector<4x9xf32> to vector<4x1xf32>
    %227 = vector.broadcast %226 : vector<4x1xf32> to vector<4x256xf32>
    %228 = arith.mulf %197, %227 : vector<4x256xf32>
    %229 = vector.extract_strided_slice %1 {offsets = [0, 5], sizes = [4, 1], strides = [1, 1]} : vector<4x9xf32> to vector<4x1xf32>
    %230 = vector.broadcast %229 : vector<4x1xf32> to vector<4x256xf32>
    %231 = arith.mulf %209, %230 : vector<4x256xf32>
    %232 = vector.extract_strided_slice %1 {offsets = [0, 6], sizes = [4, 1], strides = [1, 1]} : vector<4x9xf32> to vector<4x1xf32>
    %233 = vector.broadcast %232 : vector<4x1xf32> to vector<4x256xf32>
    %234 = arith.mulf %212, %233 : vector<4x256xf32>
    %235 = vector.extract_strided_slice %1 {offsets = [0, 7], sizes = [4, 1], strides = [1, 1]} : vector<4x9xf32> to vector<4x1xf32>
    %236 = vector.broadcast %235 : vector<4x1xf32> to vector<4x256xf32>
    %237 = arith.mulf %201, %236 : vector<4x256xf32>
    %238 = vector.extract_strided_slice %1 {offsets = [0, 8], sizes = [4, 1], strides = [1, 1]} : vector<4x9xf32> to vector<4x1xf32>
    %239 = vector.broadcast %238 : vector<4x1xf32> to vector<4x256xf32>
    %240 = arith.mulf %213, %239 : vector<4x256xf32>
    %241 = arith.addf %216, %219 : vector<4x256xf32>
    %242 = arith.addf %222, %225 : vector<4x256xf32>
    %243 = arith.addf %241, %242 : vector<4x256xf32>
    %244 = arith.addf %228, %231 : vector<4x256xf32>
    %245 = arith.addf %234, %237 : vector<4x256xf32>
    %246 = arith.addf %244, %245 : vector<4x256xf32>
    %247 = arith.addf %243, %246 : vector<4x256xf32>
    %248 = vector.broadcast %2 : vector<4x1xf32> to vector<4x256xf32>
    %249 = arith.addf %240, %248 : vector<4x256xf32>
    %250 = arith.addf %247, %249 : vector<4x256xf32>
    %251 = vector.shape_cast %250 : vector<4x256xf32> to vector<1x4x256xf32>
    %cst_47 = arith.constant dense<0.000000e+00> : vector<1xf32>
    %252 = vector.multi_reduction <add>, %251, %cst_47 [1, 2] : vector<1x4x256xf32> to vector<1xf32>
    %253 = vector.shape_cast %252 : vector<1xf32> to vector<1x1x1xf32>
    %254 = vector.extract %253[0, 0, 0] : f32 from vector<1x1x1xf32>
    %255 = arith.mulf %250, %250 : vector<4x256xf32>
    %256 = vector.shape_cast %255 : vector<4x256xf32> to vector<1x4x256xf32>
    %cst_48 = arith.constant dense<0.000000e+00> : vector<1xf32>
    %257 = vector.multi_reduction <add>, %256, %cst_48 [1, 2] : vector<1x4x256xf32> to vector<1xf32>
    %258 = vector.shape_cast %257 : vector<1xf32> to vector<1x1x1xf32>
    %259 = vector.extract %258[0, 0, 0] : f32 from vector<1x1x1xf32>
    %cst_49 = arith.constant 9.765625E-4 : f32
    %260 = arith.mulf %254, %cst_49 : f32
    %cst_50 = arith.constant 9.765625E-4 : f32
    %261 = arith.mulf %259, %cst_50 : f32
    %262 = arith.mulf %260, %260 : f32
    %263 = arith.subf %261, %262 : f32
    %cst_51 = arith.constant 9.99999974E-6 : f32
    %264 = arith.addf %263, %cst_51 : f32
    %265 = math.rsqrt %264 : f32
    %266 = vector.broadcast %265 : f32 to vector<4x1xf32>
    %267 = arith.mulf %3, %266 : vector<4x1xf32>
    %268 = vector.broadcast %260 : f32 to vector<4x1xf32>
    %269 = arith.mulf %268, %267 : vector<4x1xf32>
    %270 = arith.subf %4, %269 : vector<4x1xf32>
    %271 = vector.broadcast %267 : vector<4x1xf32> to vector<4x256xf32>
    %272 = arith.mulf %250, %271 : vector<4x256xf32>
    %273 = vector.broadcast %270 : vector<4x1xf32> to vector<4x256xf32>
    %274 = arith.addf %272, %273 : vector<4x256xf32>
    %cst_52 = arith.constant 0.000000e+00 : f32
    %275 = vector.broadcast %cst_52 : f32 to vector<4x256xf32>
    %276 = arith.maximumf %274, %275 : vector<4x256xf32>
    %c16_i32_53 = arith.constant 16 : i32
    %277 = tpu.dynamic_rotate %276 by %c16_i32_53 dim 1 : vector<4x256xf32>, i32 -> vector<4x256xf32>
    %c240_i32_54 = arith.constant 240 : i32
    %278 = tpu.dynamic_rotate %276 by %c240_i32_54 dim 1 : vector<4x256xf32>, i32 -> vector<4x256xf32>
    %279 = arith.select %27, %278, %277 : vector<4x256xi1>, vector<4x256xf32>
    %280 = arith.select %29, %277, %278 : vector<4x256xi1>, vector<4x256xf32>
    %c1_i32_55 = arith.constant 1 : i32
    %281 = tpu.dynamic_rotate %279 by %c1_i32_55 dim 1 : vector<4x256xf32>, i32 -> vector<4x256xf32>
    %c255_i32_56 = arith.constant 255 : i32
    %282 = tpu.dynamic_rotate %279 by %c255_i32_56 dim 1 : vector<4x256xf32>, i32 -> vector<4x256xf32>
    %283 = arith.select %31, %282, %281 : vector<4x256xi1>, vector<4x256xf32>
    %284 = arith.select %33, %281, %282 : vector<4x256xi1>, vector<4x256xf32>
    %c1_i32_57 = arith.constant 1 : i32
    %285 = tpu.dynamic_rotate %276 by %c1_i32_57 dim 1 : vector<4x256xf32>, i32 -> vector<4x256xf32>
    %c255_i32_58 = arith.constant 255 : i32
    %286 = tpu.dynamic_rotate %276 by %c255_i32_58 dim 1 : vector<4x256xf32>, i32 -> vector<4x256xf32>
    %287 = arith.select %31, %286, %285 : vector<4x256xi1>, vector<4x256xf32>
    %288 = arith.select %33, %285, %286 : vector<4x256xi1>, vector<4x256xf32>
    %c1_i32_59 = arith.constant 1 : i32
    %289 = tpu.dynamic_rotate %280 by %c1_i32_59 dim 1 : vector<4x256xf32>, i32 -> vector<4x256xf32>
    %c255_i32_60 = arith.constant 255 : i32
    %290 = tpu.dynamic_rotate %280 by %c255_i32_60 dim 1 : vector<4x256xf32>, i32 -> vector<4x256xf32>
    %291 = arith.select %31, %290, %289 : vector<4x256xi1>, vector<4x256xf32>
    %292 = arith.select %33, %289, %290 : vector<4x256xi1>, vector<4x256xf32>
    %293 = vector.extract_strided_slice %5 {offsets = [0, 0], sizes = [4, 1], strides = [1, 1]} : vector<4x9xf32> to vector<4x1xf32>
    %294 = vector.broadcast %293 : vector<4x1xf32> to vector<4x256xf32>
    %295 = arith.mulf %283, %294 : vector<4x256xf32>
    %296 = vector.extract_strided_slice %5 {offsets = [0, 1], sizes = [4, 1], strides = [1, 1]} : vector<4x9xf32> to vector<4x1xf32>
    %297 = vector.broadcast %296 : vector<4x1xf32> to vector<4x256xf32>
    %298 = arith.mulf %279, %297 : vector<4x256xf32>
    %299 = vector.extract_strided_slice %5 {offsets = [0, 2], sizes = [4, 1], strides = [1, 1]} : vector<4x9xf32> to vector<4x1xf32>
    %300 = vector.broadcast %299 : vector<4x1xf32> to vector<4x256xf32>
    %301 = arith.mulf %284, %300 : vector<4x256xf32>
    %302 = vector.extract_strided_slice %5 {offsets = [0, 3], sizes = [4, 1], strides = [1, 1]} : vector<4x9xf32> to vector<4x1xf32>
    %303 = vector.broadcast %302 : vector<4x1xf32> to vector<4x256xf32>
    %304 = arith.mulf %287, %303 : vector<4x256xf32>
    %305 = vector.extract_strided_slice %5 {offsets = [0, 4], sizes = [4, 1], strides = [1, 1]} : vector<4x9xf32> to vector<4x1xf32>
    %306 = vector.broadcast %305 : vector<4x1xf32> to vector<4x256xf32>
    %307 = arith.mulf %276, %306 : vector<4x256xf32>
    %308 = vector.extract_strided_slice %5 {offsets = [0, 5], sizes = [4, 1], strides = [1, 1]} : vector<4x9xf32> to vector<4x1xf32>
    %309 = vector.broadcast %308 : vector<4x1xf32> to vector<4x256xf32>
    %310 = arith.mulf %288, %309 : vector<4x256xf32>
    %311 = vector.extract_strided_slice %5 {offsets = [0, 6], sizes = [4, 1], strides = [1, 1]} : vector<4x9xf32> to vector<4x1xf32>
    %312 = vector.broadcast %311 : vector<4x1xf32> to vector<4x256xf32>
    %313 = arith.mulf %291, %312 : vector<4x256xf32>
    %314 = vector.extract_strided_slice %5 {offsets = [0, 7], sizes = [4, 1], strides = [1, 1]} : vector<4x9xf32> to vector<4x1xf32>
    %315 = vector.broadcast %314 : vector<4x1xf32> to vector<4x256xf32>
    %316 = arith.mulf %280, %315 : vector<4x256xf32>
    %317 = vector.extract_strided_slice %5 {offsets = [0, 8], sizes = [4, 1], strides = [1, 1]} : vector<4x9xf32> to vector<4x1xf32>
    %318 = vector.broadcast %317 : vector<4x1xf32> to vector<4x256xf32>
    %319 = arith.mulf %292, %318 : vector<4x256xf32>
    %320 = arith.addf %295, %298 : vector<4x256xf32>
    %321 = arith.addf %301, %304 : vector<4x256xf32>
    %322 = arith.addf %320, %321 : vector<4x256xf32>
    %323 = arith.addf %307, %310 : vector<4x256xf32>
    %324 = arith.addf %313, %316 : vector<4x256xf32>
    %325 = arith.addf %323, %324 : vector<4x256xf32>
    %326 = arith.addf %322, %325 : vector<4x256xf32>
    %327 = vector.broadcast %6 : vector<4x1xf32> to vector<4x256xf32>
    %328 = arith.addf %319, %327 : vector<4x256xf32>
    %329 = arith.addf %326, %328 : vector<4x256xf32>
    %330 = vector.shape_cast %329 : vector<4x256xf32> to vector<1x4x256xf32>
    %cst_61 = arith.constant dense<0.000000e+00> : vector<1xf32>
    %331 = vector.multi_reduction <add>, %330, %cst_61 [1, 2] : vector<1x4x256xf32> to vector<1xf32>
    %332 = vector.shape_cast %331 : vector<1xf32> to vector<1x1x1xf32>
    %333 = vector.extract %332[0, 0, 0] : f32 from vector<1x1x1xf32>
    %334 = arith.mulf %329, %329 : vector<4x256xf32>
    %335 = vector.shape_cast %334 : vector<4x256xf32> to vector<1x4x256xf32>
    %cst_62 = arith.constant dense<0.000000e+00> : vector<1xf32>
    %336 = vector.multi_reduction <add>, %335, %cst_62 [1, 2] : vector<1x4x256xf32> to vector<1xf32>
    %337 = vector.shape_cast %336 : vector<1xf32> to vector<1x1x1xf32>
    %338 = vector.extract %337[0, 0, 0] : f32 from vector<1x1x1xf32>
    %cst_63 = arith.constant 9.765625E-4 : f32
    %339 = arith.mulf %333, %cst_63 : f32
    %cst_64 = arith.constant 9.765625E-4 : f32
    %340 = arith.mulf %338, %cst_64 : f32
    %341 = arith.mulf %339, %339 : f32
    %342 = arith.subf %340, %341 : f32
    %cst_65 = arith.constant 9.99999974E-6 : f32
    %343 = arith.addf %342, %cst_65 : f32
    %344 = math.rsqrt %343 : f32
    %345 = vector.broadcast %344 : f32 to vector<4x1xf32>
    %346 = arith.mulf %7, %345 : vector<4x1xf32>
    %347 = vector.broadcast %339 : f32 to vector<4x1xf32>
    %348 = arith.mulf %347, %346 : vector<4x1xf32>
    %349 = arith.subf %8, %348 : vector<4x1xf32>
    %350 = vector.broadcast %346 : vector<4x1xf32> to vector<4x256xf32>
    %351 = arith.mulf %329, %350 : vector<4x256xf32>
    %352 = vector.broadcast %349 : vector<4x1xf32> to vector<4x256xf32>
    %353 = arith.addf %351, %352 : vector<4x256xf32>
    %354 = arith.addf %197, %353 : vector<4x256xf32>
    %c1_66 = arith.constant 1 : index
    %c0_67 = arith.constant 0 : index
    %c0_68 = arith.constant 0 : index
    %355 = vector.load %arg3[%c1_66, %c0_67, %c0_68] : memref<2x4x256xf32, #tpu.memory_space<vmem>>, vector<1x4x256xf32>
    %356 = vector.shape_cast %355 : vector<1x4x256xf32> to vector<4x256xf32>
    %357 = vector.shape_cast %354 : vector<4x256xf32> to vector<1x4x256xf32>
    tpu.vector_store %arg3[%c1_66, %c0_67, %c0_68], %357 {strides = array<i32>} : memref<2x4x256xf32, #tpu.memory_space<vmem>>, vector<1x4x256xf32>,
    return
  }
  func.func @transform_0(%arg0: i32) -> (i32, i32, i32) {
    %c0_i32 = arith.constant 0 : i32
    %c0_i32_0 = arith.constant 0 : i32
    %c0_i32_1 = arith.constant 0 : i32
    return %arg0, %c0_i32, %c0_i32_0 : i32, i32, i32
  }
  func.func @transform_1(%arg0: i32) -> (i32, i32) {
    %c0_i32 = arith.constant 0 : i32
    %c0_i32_0 = arith.constant 0 : i32
    %c0_i32_1 = arith.constant 0 : i32
    return %c0_i32, %c0_i32_0 : i32, i32
  }
  func.func @transform_2(%arg0: i32) -> (i32, i32, i32) {
    %c0_i32 = arith.constant 0 : i32
    %c0_i32_0 = arith.constant 0 : i32
    %c0_i32_1 = arith.constant 0 : i32
    return %arg0, %c0_i32, %c0_i32_0 : i32, i32, i32
  }
}

</mosaic_0001>

<llo_original>
// kernel: tpu_custom_call.1
$region0: #{tpu_custom_call.1}
  #allocation0 [shape = 'u32[]', space=smem, size = 0x4, offset = 0x4, fixed_abs, tag = 'smem constant byte address 0x4 - core index']
  #allocation1 [shape = 'u32[72,128]{1,0:T(1,128)}', space=vmem, size = 0x9000, scoped, tag = 'internal scratch']
  %s0 = inlined_call_operand.hbm [shape: f32[2,4,256], index: 0, kind: input, shape index: {}]
  %s1 = inlined_call_operand.hbm [shape: f32[4,24], index: 1, kind: input, shape index: {}]
  %s2 = inlined_call_operand.hbm [shape: f32[2,4,256], index: 2, kind: output, shape index: {}]
  %s3 = sld [smem:[#allocation0]]
  $region26: #{tpu_custom_call.1} parent=0
    _
  %s5 = ssub.s32 1, %s3
  %s6 = scalar_select 0, %s5, %s3
  $region1: #{tpu_custom_call.1} parent=0
    #allocation2 [shape = 'u8[8192]{0}', space=vmem, size = 0x2000, scoped, tag = 'input window, operand 0, single buffered']
    #allocation3 [shape = 's32[1]{0}', space=sflag, size = 0x4, scoped, tag = 'scoped memory for tpu_custom_call.1']
    #allocation4 [shape = 's32[1]{0}', space=sflag, size = 0x4, scoped, tag = 'scoped memory for tpu_custom_call.1']
    #allocation5 [shape = 'u8[2048]{0}', space=vmem, size = 0x800, scoped, tag = 'input window, operand 1, single buffered']
    #allocation6 [shape = 's32[1]{0}', space=sflag, size = 0x4, scoped, tag = 'scoped memory for tpu_custom_call.1']
    #allocation7 [shape = 'u8[8192]{0}', space=vmem, size = 0x2000, scoped, tag = 'output window, operand 0, single buffered']
    %7 = vsyncpa [#allocation3], 0
    %8 = vsyncpa [#allocation6], 0
    %9 = vsyncpa [#allocation4], 0
    // Predicated region
    $region2: #{tpu_custom_call.1} parent=1 // pred_check
      _
    $region3: #{tpu_custom_call.1} parent=1 // pred_check_branch
      %11 = sbr.rel (0) target = $region5
    $region4: #{tpu_custom_call.1} parent=1 // pred_region
      %13 = vsyncadd [#allocation3], 0
      %s14 = sshll.u32 %s0, 4
      %s15 = int_to_ptr.hbm [resolvable:$true] %s14
      %s16 = sshll.u32 [#allocation2], 4
      %s17 = int_to_ptr.vmem [resolvable:$true] %s16
      %22 = dma.hbm_to_vmem [thread:$0]  %s15, 256, %s17, [#allocation3], 128, 128, 8
    $region5: #{tpu_custom_call.1} parent=1 // pred_fallthru
      _
    // Predicated region
    $region6: #{tpu_custom_call.1} parent=1 // pred_check
      _
    $region7: #{tpu_custom_call.1} parent=1 // pred_check_branch
      %24 = sbr.rel (0) target = $region9
    $region8: #{tpu_custom_call.1} parent=1 // pred_region
      %26 = vsyncadd [#allocation6], 0
      %s28 = sshll.u32 %s1, 4
      %s29 = int_to_ptr.hbm [resolvable:$true] %s28
      %s30 = sshll.u32 [#allocation5], 4
      %s31 = int_to_ptr.vmem [resolvable:$true] %s30
      %33 = dma.hbm_to_vmem [thread:$0]  %s29, 64, %s31, [#allocation6]
    $region9: #{tpu_custom_call.1} parent=1 // pred_fallthru
      _
    // Predicated region
    $region10: #{tpu_custom_call.1} parent=1 // pred_check
      _
    $region11: #{tpu_custom_call.1} parent=1 // pred_check_branch
      %35 = sbr.rel (0) target = $region13
    $region12: #{tpu_custom_call.1} parent=1 // pred_region
      %37 = dma.done [#allocation3], 256
    $region13: #{tpu_custom_call.1} parent=1 // pred_fallthru
      _
    // Predicated region
    $region14: #{tpu_custom_call.1} parent=1 // pred_check
      _
    $region15: #{tpu_custom_call.1} parent=1 // pred_check_branch
      %39 = sbr.rel (0) target = $region17
    $region16: #{tpu_custom_call.1} parent=1 // pred_region
      %41 = dma.done [#allocation6], 64
    $region17: #{tpu_custom_call.1} parent=1 // pred_fallthru
      _
    %v42 = vld [vmem:[#allocation5] sm:$0xf]
    %v43 = vlaneseq
    %v44 = vand.u32 %v43, 127
    %v45 = vadd.s32 %v44, 128
    %vm46 = vcmp.lt.s32.totalorder %v44, 0
    %v47 = vsub.s32 0, %v44
    %v48 = vsel %vm46, %v47, %v44
    %v49 = vshrl.u32 %v48, 4
    %v50 = vand.u32 %v48, 15
    %v51 = vsub.s32 0, %v50
    %v52 = vsel %vm46, %v51, %v50
    %vm53 = vcmp.lt.s32.totalorder %v45, 0
    %v54 = vsub.s32 0, %v45
    %v55 = vsel %vm53, %v54, %v45
    %v56 = vshrl.u32 %v55, 4
    %v57 = vand.u32 %v55, 15
    %v58 = vsub.s32 0, %v57
    %v59 = vsel %vm53, %v58, %v57
    %vm60 = vcmp.ne.s32.totalorder %v52, 0
    %vm61 = vcmp.ne.s32.totalorder %v59, 0
    %vm62 = vcmp.lt.s32.totalorder %v52, 0
    %vm63 = vcmp.lt.s32.totalorder %v59, 0
    %vm64 = vmand %vm62, %vm60
    %vm65 = vmand %vm63, %vm61
    %v66 = vadd.s32 %v52, 16
    %v67 = vadd.s32 %v59, 16
    %v68 = vsel %vm64, %v66, %v52
    %v69 = vsel %vm65, %v67, %v59
    %vm70 = vcmp.lt.s32.totalorder %v44, 16
    %vm71 = vcmp.lt.s32.totalorder %v45, 16
    %vm72 = vcmp.ge.s32.totalorder %v44, 240
    %vm73 = vcmp.ge.s32.totalorder %v45, 240
    %vm74 = vcmp.eq.s32.totalorder %v68, 0
    %vm75 = vcmp.eq.s32.totalorder %v69, 0
    %vm76 = vcmp.eq.s32.totalorder %v68, 15
    %vm77 = vcmp.eq.s32.totalorder %v69, 15
    %v78 = vld [vmem:[#allocation2] sm:$0xff]
    %80 = vst [vmem:[#allocation1] ss:$2 sm:$0xff] %v78
    %v81 = vld.sshfl [vmem:[#allocation1] sm:$0xff pattern:$0x75316420]
    %v82 = vld.sshfl [vmem:[#allocation1 + $0x8] sm:$0xff pattern:$0x75316420]
    %85 = vrot.lane.b32.xlu0 %v81, 16
    %v86 = vpop.permute.xlu0 %85
    %87 = vrot.lane.b32.xlu0 %v82, 16
    %v88 = vpop.permute.xlu0 %87
    %v89 = vsel %vm70, %v86, %v88
    %v90 = vsel %vm70, %v88, %v86
    %91 = vst [vmem:[#allocation1] ss:$2 sm:$0xff] %v78
    %v92 = vld.sshfl [vmem:[#allocation1] sm:$0xff pattern:$0x75316420]
    %v93 = vld.sshfl [vmem:[#allocation1 + $0x8] sm:$0xff pattern:$0x75316420]
    %96 = vrot.lane.b32.xlu0 %v92, 112
    %v97 = vpop.permute.xlu0 %96
    %98 = vrot.lane.b32.xlu0 %v93, 112
    %v99 = vpop.permute.xlu0 %98
    %vm100 = vcmp.lt.s32.totalorder %v44, 112
    %v101 = vsel %vm100, %v97, %v99
    %v102 = vsel %vm100, %v99, %v97
    %v103 = vsel %vm70, %v101, %v90
    %v104 = vsel %vm71, %v102, %v89
    %v105 = vsel %vm72, %v90, %v101
    %v106 = vsel %vm73, %v89, %v102
    %107 = vrot.lane.b32.xlu0 %v103, 1
    %v108 = vpop.permute.xlu0 %107
    %109 = vrot.lane.b32.xlu0 %v104, 1
    %v110 = vpop.permute.xlu0 %109
    %vm111 = vcmp.lt.s32.totalorder %v44, 1
    %v112 = vsel %vm111, %v108, %v110
    %v113 = vsel %vm111, %v110, %v108
    %114 = vrot.lane.b32.xlu0 %v103, 127
    %v115 = vpop.permute.xlu0 %114
    %116 = vrot.lane.b32.xlu0 %v104, 127
    %v117 = vpop.permute.xlu0 %116
    %vm118 = vcmp.lt.s32.totalorder %v44, 127
    %v119 = vsel %vm118, %v115, %v117
    %v120 = vsel %vm118, %v117, %v115
    %v121 = vsel %vm74, %v119, %v113
    %v122 = vsel %vm75, %v120, %v112
    %v123 = vsel %vm76, %v113, %v119
    %v124 = vsel %vm77, %v112, %v120
    %125 = vst [vmem:[#allocation1] ss:$2 sm:$0xff] %v78
    %v126 = vld.sshfl [vmem:[#allocation1] sm:$0xff pattern:$0x75316420]
    %v127 = vld.sshfl [vmem:[#allocation1 + $0x8] sm:$0xff pattern:$0x75316420]
    %130 = vrot.lane.b32.xlu0 %v126, 1
    %v131 = vpop.permute.xlu0 %130
    %132 = vrot.lane.b32.xlu0 %v127, 1
    %v133 = vpop.permute.xlu0 %132
    %v134 = vsel %vm111, %v131, %v133
    %v135 = vsel %vm111, %v133, %v131
    %136 = vst [vmem:[#allocation1] ss:$2 sm:$0xff] %v78
    %v137 = vld.sshfl [vmem:[#allocation1] sm:$0xff pattern:$0x75316420]
    %v138 = vld.sshfl [vmem:[#allocation1 + $0x8] sm:$0xff pattern:$0x75316420]
    %141 = vrot.lane.b32.xlu0 %v137, 127
    %v142 = vpop.permute.xlu0 %141
    %143 = vrot.lane.b32.xlu0 %v138, 127
    %v144 = vpop.permute.xlu0 %143
    %v145 = vsel %vm118, %v142, %v144
    %v146 = vsel %vm118, %v144, %v142
    %v147 = vsel %vm74, %v145, %v135
    %v148 = vsel %vm75, %v146, %v134
    %v149 = vsel %vm76, %v135, %v145
    %v150 = vsel %vm77, %v134, %v146
    %151 = vrot.lane.b32.xlu0 %v105, 1
    %v152 = vpop.permute.xlu0 %151
    %153 = vrot.lane.b32.xlu0 %v106, 1
    %v154 = vpop.permute.xlu0 %153
    %v155 = vsel %vm111, %v152, %v154
    %v156 = vsel %vm111, %v154, %v152
    %157 = vrot.lane.b32.xlu0 %v105, 127
    %v158 = vpop.permute.xlu0 %157
    %159 = vrot.lane.b32.xlu0 %v106, 127
    %v160 = vpop.permute.xlu0 %159
    %v161 = vsel %vm118, %v158, %v160
    %v162 = vsel %vm118, %v160, %v158
    %v163 = vsel %vm74, %v161, %v156
    %v164 = vsel %vm75, %v162, %v155
    %v165 = vsel %vm76, %v156, %v161
    %v166 = vsel %vm77, %v155, %v162
    %168 = vset.pattern.permute.xlu0 0
    %169 = vperm.xlu0 %168, %v42
    %v170 = vpop.permute.xlu0 %169
    %v172 = vmul.f32 %v121, %v170
    %v173 = vmul.f32 %v122, %v170
    %174 = vset.pattern.permute.xlu0 1
    %175 = vperm.xlu0 %174, %v42
    %v176 = vpop.permute.xlu0 %175
    %v178 = vmul.f32 %v103, %v176
    %v179 = vmul.f32 %v104, %v176
    %180 = vset.pattern.permute.xlu0 2
    %181 = vperm.xlu0 %180, %v42
    %v182 = vpop.permute.xlu0 %181
    %v184 = vmul.f32 %v123, %v182
    %v185 = vmul.f32 %v124, %v182
    %186 = vset.pattern.permute.xlu0 3
    %187 = vperm.xlu0 %186, %v42
    %v188 = vpop.permute.xlu0 %187
    %v190 = vmul.f32 %v147, %v188
    %v191 = vmul.f32 %v148, %v188
    %192 = vset.pattern.permute.xlu0 4
    %193 = vperm.xlu0 %192, %v42
    %v194 = vpop.permute.xlu0 %193
    %v196 = vunpack.c.l.s4 839922192
    %v197 = vunpack.c.0.s8 %v196
    %v198 = vperm.slane %v194, %v197
    %v200 = vmul.f32 %v78, %v198
    %201 = vset.pattern.permute.xlu0 5
    %202 = vperm.xlu0 %201, %v42
    %v203 = vpop.permute.xlu0 %202
    %v205 = vmul.f32 %v149, %v203
    %v206 = vmul.f32 %v150, %v203
    %207 = vset.pattern.permute.xlu0 6
    %208 = vperm.xlu0 %207, %v42
    %v209 = vpop.permute.xlu0 %208
    %v211 = vmul.f32 %v163, %v209
    %v212 = vmul.f32 %v164, %v209
    %213 = vset.pattern.permute.xlu0 7
    %214 = vperm.xlu0 %213, %v42
    %v215 = vpop.permute.xlu0 %214
    %v217 = vmul.f32 %v105, %v215
    %v218 = vmul.f32 %v106, %v215
    %219 = vset.pattern.permute.xlu0 8
    %220 = vperm.xlu0 %219, %v42
    %v221 = vpop.permute.xlu0 %220
    %v223 = vmul.f32 %v165, %v221
    %v224 = vmul.f32 %v166, %v221
    %v225 = vadd.f32 %v172, %v178
    %v226 = vadd.f32 %v173, %v179
    %v227 = vadd.f32 %v184, %v190
    %v228 = vadd.f32 %v185, %v191
    %v229 = vadd.f32 %v225, %v227
    %v230 = vadd.f32 %v226, %v228
    %v233 = vrot.slane %v206, 4
    %vm234 = vcmask 1043456
    %v235 = vsel %vm234, %v205, %v233
    %v237 = vadd.f32 %v200, %v235
    %v238 = vadd.f32 %v211, %v217
    %v239 = vadd.f32 %v212, %v218
    %v242 = vrot.slane %v239, 4
    %v243 = vsel %vm234, %v238, %v242
    %v245 = vadd.f32 %v237, %v243
    %247 = vst [vmem:[#allocation1] ss:$2 sm:$0xff] %v245
    %v248 = vld.sshfl [vmem:[#allocation1] sm:$0xff pattern:$0x75316420]
    %v249 = vld.sshfl [vmem:[#allocation1 + $0x8] sm:$0xff pattern:$0x75316420]
    %v252 = vadd.f32 %v229, %v248
    %v253 = vadd.f32 %v230, %v249
    %254 = vset.pattern.permute.xlu0 9
    %255 = vperm.xlu0 %254, %v42
    %v256 = vpop.permute.xlu0 %255
    %v258 = vadd.f32 %v223, %v256
    %v259 = vadd.f32 %v224, %v256
    %v260 = vadd.f32 %v252, %v258
    %v261 = vadd.f32 %v253, %v259
    %v262 = vsel %vm234, %v260, 0.0
    %v263 = vsel %vm234, %v261, 0.0
    %v264 = vadd.f32 %v262, %v263
    %265 = vadd.xlane.f32.xlu0 %v264
    %v266 = vpop.xlane.xlu0 %265
    %v267 = vrot.slane %v266, 4
    %v268 = vadd.f32 %v266, %v267
    %v269 = vrot.slane %v268, 2
    %v270 = vadd.f32 %v268, %v269
    %v271 = vrot.slane %v270, 1
    %v272 = vadd.f32 %v270, %v271
    %s273 = vtos %v272
    %v274 = vmul.f32 %v260, %v260
    %v275 = vmul.f32 %v261, %v261
    %v276 = vsel %vm234, %v274, 0.0
    %v277 = vsel %vm234, %v275, 0.0
    %v278 = vadd.f32 %v276, %v277
    %279 = vadd.xlane.f32.xlu0 %v278
    %v280 = vpop.xlane.xlu0 %279
    %v281 = vrot.slane %v280, 4
    %v282 = vadd.f32 %v280, %v281
    %v283 = vrot.slane %v282, 2
    %v284 = vadd.f32 %v282, %v283
    %v285 = vrot.slane %v284, 1
    %v286 = vadd.f32 %v284, %v285
    %s287 = vtos %v286
    %s288 = smul.f32 %s273, 0.0009765625
    %s289 = smul.f32 %s287, 0.0009765625
    %s290 = smul.f32 %s288, %s288
    %s291 = ssub.f32 %s289, %s290
    %s292 = sadd.f32 %s291, 1e-05
    %v293 = vstv %s292
    %v294 = vrsqrt.pop %v293
    %v295 = vmul.f32 %v294, %v293
    %v296 = vmul.f32 %v295, %v294
    %v297 = vmul.f32 0.5, %v296
    %v298 = vsub.f32 1.5, %v297
    %v299 = vmul.f32 %v294, %v298
    %vm300 = vweird.f32 %v293
    %vm301 = vweird.f32 %v294
    %vm302 = vmor %vm300, %vm301
    %v303 = vsel %vm302, %v294, %v299
    %s304 = vtos %v303
    %v305 = vstv %s304
    %v306 = vmul.f32 %v42, %v305
    %v307 = vstv %s288
    %v308 = vmul.f32 %v307, %v306
    %310 = vrot.lane.b32.xlu0 %v308, 1
    %v311 = vpop.permute.xlu0 %310
    %v313 = vsub.f32 %v42, %v311
    %315 = vset.pattern.permute.xlu0 10
    %316 = vperm.xlu0 %315, %v306
    %v317 = vpop.permute.xlu0 %316
    %v319 = vmul.f32 %v260, %v317
    %v320 = vmul.f32 %v261, %v317
    %322 = vset.pattern.permute.xlu0 11
    %323 = vperm.xlu0 %322, %v313
    %v324 = vpop.permute.xlu0 %323
    %v326 = vadd.f32 %v319, %v324
    %v327 = vadd.f32 %v320, %v324
    %v328 = vmax.f32 %v326, 0.0
    %v329 = vmax.f32 %v327, 0.0
    %330 = vrot.lane.b32.xlu0 %v328, 16
    %v331 = vpop.permute.xlu0 %330
    %332 = vrot.lane.b32.xlu0 %v329, 16
    %v333 = vpop.permute.xlu0 %332
    %v334 = vsel %vm70, %v331, %v333
    %v335 = vsel %vm70, %v333, %v331
    %336 = vrot.lane.b32.xlu0 %v328, 112
    %v337 = vpop.permute.xlu0 %336
    %338 = vrot.lane.b32.xlu0 %v329, 112
    %v339 = vpop.permute.xlu0 %338
    %v340 = vsel %vm100, %v337, %v339
    %v341 = vsel %vm100, %v339, %v337
    %v342 = vsel %vm70, %v340, %v335
    %v343 = vsel %vm71, %v341, %v334
    %v344 = vsel %vm72, %v335, %v340
    %v345 = vsel %vm73, %v334, %v341
    %346 = vrot.lane.b32.xlu0 %v342, 1
    %v347 = vpop.permute.xlu0 %346
    %348 = vrot.lane.b32.xlu0 %v343, 1
    %v349 = vpop.permute.xlu0 %348
    %v350 = vsel %vm111, %v347, %v349
    %v351 = vsel %vm111, %v349, %v347
    %352 = vrot.lane.b32.xlu0 %v342, 127
    %v353 = vpop.permute.xlu0 %352
    %354 = vrot.lane.b32.xlu0 %v343, 127
    %v355 = vpop.permute.xlu0 %354
    %v356 = vsel %vm118, %v353, %v355
    %v357 = vsel %vm118, %v355, %v353
    %v358 = vsel %vm74, %v356, %v351
    %v359 = vsel %vm75, %v357, %v350
    %v360 = vsel %vm76, %v351, %v356
    %v361 = vsel %vm77, %v350, %v357
    %362 = vrot.lane.b32.xlu0 %v328, 1
    %v363 = vpop.permute.xlu0 %362
    %364 = vrot.lane.b32.xlu0 %v329, 1
    %v365 = vpop.permute.xlu0 %364
    %v366 = vsel %vm111, %v363, %v365
    %v367 = vsel %vm111, %v365, %v363
    %368 = vrot.lane.b32.xlu0 %v328, 127
    %v369 = vpop.permute.xlu0 %368
    %370 = vrot.lane.b32.xlu0 %v329, 127
    %v371 = vpop.permute.xlu0 %370
    %v372 = vsel %vm118, %v369, %v371
    %v373 = vsel %vm118, %v371, %v369
    %v374 = vsel %vm74, %v372, %v367
    %v375 = vsel %vm75, %v373, %v366
    %v376 = vsel %vm76, %v367, %v372
    %v377 = vsel %vm77, %v366, %v373
    %378 = vrot.lane.b32.xlu0 %v344, 1
    %v379 = vpop.permute.xlu0 %378
    %380 = vrot.lane.b32.xlu0 %v345, 1
    %v381 = vpop.permute.xlu0 %380
    %v382 = vsel %vm111, %v379, %v381
    %v383 = vsel %vm111, %v381, %v379
    %384 = vrot.lane.b32.xlu0 %v344, 127
    %v385 = vpop.permute.xlu0 %384
    %386 = vrot.lane.b32.xlu0 %v345, 127
    %v387 = vpop.permute.xlu0 %386
    %v388 = vsel %vm118, %v385, %v387
    %v389 = vsel %vm118, %v387, %v385
    %v390 = vsel %vm74, %v388, %v383
    %v391 = vsel %vm75, %v389, %v382
    %v392 = vsel %vm76, %v383, %v388
    %v393 = vsel %vm77, %v382, %v389
    %394 = vset.pattern.permute.xlu0 12
    %395 = vperm.xlu0 %394, %v42
    %v396 = vpop.permute.xlu0 %395
    %v398 = vmul.f32 %v358, %v396
    %v399 = vmul.f32 %v359, %v396
    %400 = vset.pattern.permute.xlu0 13
    %401 = vperm.xlu0 %400, %v42
    %v402 = vpop.permute.xlu0 %401
    %v404 = vmul.f32 %v342, %v402
    %v405 = vmul.f32 %v343, %v402
    %406 = vset.pattern.permute.xlu0 14
    %407 = vperm.xlu0 %406, %v42
    %v408 = vpop.permute.xlu0 %407
    %v410 = vmul.f32 %v360, %v408
    %v411 = vmul.f32 %v361, %v408
    %412 = vset.pattern.permute.xlu0 15
    %413 = vperm.xlu0 %412, %v42
    %v414 = vpop.permute.xlu0 %413
    %v416 = vmul.f32 %v374, %v414
    %v417 = vmul.f32 %v375, %v414
    %418 = vset.pattern.permute.xlu0 16
    %419 = vperm.xlu0 %418, %v42
    %v420 = vpop.permute.xlu0 %419
    %v422 = vmul.f32 %v328, %v420
    %v423 = vmul.f32 %v329, %v420
    %424 = vset.pattern.permute.xlu0 17
    %425 = vperm.xlu0 %424, %v42
    %v426 = vpop.permute.xlu0 %425
    %v428 = vmul.f32 %v376, %v426
    %v429 = vmul.f32 %v377, %v426
    %430 = vset.pattern.permute.xlu0 18
    %431 = vperm.xlu0 %430, %v42
    %v432 = vpop.permute.xlu0 %431
    %v434 = vmul.f32 %v390, %v432
    %v435 = vmul.f32 %v391, %v432
    %436 = vset.pattern.permute.xlu0 19
    %437 = vperm.xlu0 %436, %v42
    %v438 = vpop.permute.xlu0 %437
    %v440 = vmul.f32 %v344, %v438
    %v441 = vmul.f32 %v345, %v438
    %442 = vset.pattern.permute.xlu0 20
    %443 = vperm.xlu0 %442, %v42
    %v444 = vpop.permute.xlu0 %443
    %v446 = vmul.f32 %v392, %v444
    %v447 = vmul.f32 %v393, %v444
    %v448 = vadd.f32 %v398, %v404
    %v449 = vadd.f32 %v399, %v405
    %v450 = vadd.f32 %v410, %v416
    %v451 = vadd.f32 %v411, %v417
    %v452 = vadd.f32 %v448, %v450
    %v453 = vadd.f32 %v449, %v451
    %v454 = vadd.f32 %v422, %v428
    %v455 = vadd.f32 %v423, %v429
    %v456 = vadd.f32 %v434, %v440
    %v457 = vadd.f32 %v435, %v441
    %v458 = vadd.f32 %v454, %v456
    %v459 = vadd.f32 %v455, %v457
    %v460 = vadd.f32 %v452, %v458
    %v461 = vadd.f32 %v453, %v459
    %462 = vset.pattern.permute.xlu0 21
    %463 = vperm.xlu0 %462, %v42
    %v464 = vpop.permute.xlu0 %463
    %v466 = vadd.f32 %v446, %v464
    %v467 = vadd.f32 %v447, %v464
    %v468 = vadd.f32 %v460, %v466
    %v469 = vadd.f32 %v461, %v467
    %v470 = vsel %vm234, %v468, 0.0
    %v471 = vsel %vm234, %v469, 0.0
    %v472 = vadd.f32 %v470, %v471
    %473 = vadd.xlane.f32.xlu0 %v472
    %v474 = vpop.xlane.xlu0 %473
    %v475 = vrot.slane %v474, 4
    %v476 = vadd.f32 %v474, %v475
    %v477 = vrot.slane %v476, 2
    %v478 = vadd.f32 %v476, %v477
    %v479 = vrot.slane %v478, 1
    %v480 = vadd.f32 %v478, %v479
    %s481 = vtos %v480
    %v482 = vmul.f32 %v468, %v468
    %v483 = vmul.f32 %v469, %v469
    %v484 = vsel %vm234, %v482, 0.0
    %v485 = vsel %vm234, %v483, 0.0
    %v486 = vadd.f32 %v484, %v485
    %487 = vadd.xlane.f32.xlu0 %v486
    %v488 = vpop.xlane.xlu0 %487
    %v489 = vrot.slane %v488, 4
    %v490 = vadd.f32 %v488, %v489
    %v491 = vrot.slane %v490, 2
    %v492 = vadd.f32 %v490, %v491
    %v493 = vrot.slane %v492, 1
    %v494 = vadd.f32 %v492, %v493
    %s495 = vtos %v494
    %s496 = smul.f32 %s481, 0.0009765625
    %s497 = smul.f32 %s495, 0.0009765625
    %s498 = smul.f32 %s496, %s496
    %s499 = ssub.f32 %s497, %s498
    %s500 = sadd.f32 %s499, 1e-05
    %v501 = vstv %s500
    %v502 = vrsqrt.pop %v501
    %v503 = vmul.f32 %v502, %v501
    %v504 = vmul.f32 %v503, %v502
    %v505 = vmul.f32 0.5, %v504
    %v506 = vsub.f32 1.5, %v505
    %v507 = vmul.f32 %v502, %v506
    %vm508 = vweird.f32 %v501
    %vm509 = vweird.f32 %v502
    %vm510 = vmor %vm508, %vm509
    %v511 = vsel %vm510, %v502, %v507
    %s512 = vtos %v511
    %v513 = vstv %s512
    %v514 = vmul.f32 %v42, %v513
    %v515 = vstv %s496
    %v516 = vmul.f32 %v515, %v514
    %518 = vrot.lane.b32.xlu0 %v516, 1
    %v519 = vpop.permute.xlu0 %518
    %v521 = vsub.f32 %v42, %v519
    %523 = vset.pattern.permute.xlu0 22
    %524 = vperm.xlu0 %523, %v514
    %v525 = vpop.permute.xlu0 %524
    %v527 = vmul.f32 %v468, %v525
    %v528 = vmul.f32 %v469, %v525
    %530 = vset.pattern.permute.xlu0 23
    %531 = vperm.xlu0 %530, %v521
    %v532 = vpop.permute.xlu0 %531
    %v534 = vadd.f32 %v527, %v532
    %v535 = vadd.f32 %v528, %v532
    %v538 = vrot.slane %v535, 4
    %v539 = vsel %vm234, %v534, %v538
    %v541 = vadd.f32 %v78, %v539
    %542 = vst [vmem:[#allocation7] sm:$0xff] %v541
    %s543 = scalar_lea.vmem [#allocation2], 8
    %v544 = vld [vmem:[%s543] sm:$0xff]
    %546 = vst [vmem:[#allocation1] ss:$2 sm:$0xff] %v544
    %v547 = vld.sshfl [vmem:[#allocation1] sm:$0xff pattern:$0x75316420]
    %v548 = vld.sshfl [vmem:[#allocation1 + $0x8] sm:$0xff pattern:$0x75316420]
    %551 = vrot.lane.b32.xlu0 %v547, 16
    %v552 = vpop.permute.xlu0 %551
    %553 = vrot.lane.b32.xlu0 %v548, 16
    %v554 = vpop.permute.xlu0 %553
    %v555 = vsel %vm70, %v552, %v554
    %v556 = vsel %vm70, %v554, %v552
    %557 = vst [vmem:[#allocation1] ss:$2 sm:$0xff] %v544
    %v558 = vld.sshfl [vmem:[#allocation1] sm:$0xff pattern:$0x75316420]
    %v559 = vld.sshfl [vmem:[#allocation1 + $0x8] sm:$0xff pattern:$0x75316420]
    %562 = vrot.lane.b32.xlu0 %v558, 112
    %v563 = vpop.permute.xlu0 %562
    %564 = vrot.lane.b32.xlu0 %v559, 112
    %v565 = vpop.permute.xlu0 %564
    %v566 = vsel %vm100, %v563, %v565
    %v567 = vsel %vm100, %v565, %v563
    %v568 = vsel %vm70, %v566, %v556
    %v569 = vsel %vm71, %v567, %v555
    %v570 = vsel %vm72, %v556, %v566
    %v571 = vsel %vm73, %v555, %v567
    %572 = vrot.lane.b32.xlu0 %v568, 1
    %v573 = vpop.permute.xlu0 %572
    %574 = vrot.lane.b32.xlu0 %v569, 1
    %v575 = vpop.permute.xlu0 %574
    %v576 = vsel %vm111, %v573, %v575
    %v577 = vsel %vm111, %v575, %v573
    %578 = vrot.lane.b32.xlu0 %v568, 127
    %v579 = vpop.permute.xlu0 %578
    %580 = vrot.lane.b32.xlu0 %v569, 127
    %v581 = vpop.permute.xlu0 %580
    %v582 = vsel %vm118, %v579, %v581
    %v583 = vsel %vm118, %v581, %v579
    %v584 = vsel %vm74, %v582, %v577
    %v585 = vsel %vm75, %v583, %v576
    %v586 = vsel %vm76, %v577, %v582
    %v587 = vsel %vm77, %v576, %v583
    %588 = vst [vmem:[#allocation1] ss:$2 sm:$0xff] %v544
    %v589 = vld.sshfl [vmem:[#allocation1] sm:$0xff pattern:$0x75316420]
    %v590 = vld.sshfl [vmem:[#allocation1 + $0x8] sm:$0xff pattern:$0x75316420]
    %593 = vrot.lane.b32.xlu0 %v589, 1
    %v594 = vpop.permute.xlu0 %593
    %595 = vrot.lane.b32.xlu0 %v590, 1
    %v596 = vpop.permute.xlu0 %595
    %v597 = vsel %vm111, %v594, %v596
    %v598 = vsel %vm111, %v596, %v594
    %599 = vst [vmem:[#allocation1] ss:$2 sm:$0xff] %v544
    %v600 = vld.sshfl [vmem:[#allocation1] sm:$0xff pattern:$0x75316420]
    %v601 = vld.sshfl [vmem:[#allocation1 + $0x8] sm:$0xff pattern:$0x75316420]
    %604 = vrot.lane.b32.xlu0 %v600, 127
    %v605 = vpop.permute.xlu0 %604
    %606 = vrot.lane.b32.xlu0 %v601, 127
    %v607 = vpop.permute.xlu0 %606
    %v608 = vsel %vm118, %v605, %v607
    %v609 = vsel %vm118, %v607, %v605
    %v610 = vsel %vm74, %v608, %v598
    %v611 = vsel %vm75, %v609, %v597
    %v612 = vsel %vm76, %v598, %v608
    %v613 = vsel %vm77, %v597, %v609
    %614 = vrot.lane.b32.xlu0 %v570, 1
    %v615 = vpop.permute.xlu0 %614
    %616 = vrot.lane.b32.xlu0 %v571, 1
    %v617 = vpop.permute.xlu0 %616
    %v618 = vsel %vm111, %v615, %v617
    %v619 = vsel %vm111, %v617, %v615
    %620 = vrot.lane.b32.xlu0 %v570, 127
    %v621 = vpop.permute.xlu0 %620
    %622 = vrot.lane.b32.xlu0 %v571, 127
    %v623 = vpop.permute.xlu0 %622
    %v624 = vsel %vm118, %v621, %v623
    %v625 = vsel %vm118, %v623, %v621
    %v626 = vsel %vm74, %v624, %v619
    %v627 = vsel %vm75, %v625, %v618
    %v628 = vsel %vm76, %v619, %v624
    %v629 = vsel %vm77, %v618, %v625
    %v630 = vmul.f32 %v584, %v170
    %v631 = vmul.f32 %v585, %v170
    %v632 = vmul.f32 %v568, %v176
    %v633 = vmul.f32 %v569, %v176
    %v634 = vmul.f32 %v586, %v182
    %v635 = vmul.f32 %v587, %v182
    %v636 = vmul.f32 %v610, %v188
    %v637 = vmul.f32 %v611, %v188
    %v638 = vmul.f32 %v544, %v198
    %v639 = vmul.f32 %v612, %v203
    %v640 = vmul.f32 %v613, %v203
    %v641 = vmul.f32 %v626, %v209
    %v642 = vmul.f32 %v627, %v209
    %v643 = vmul.f32 %v570, %v215
    %v644 = vmul.f32 %v571, %v215
    %v645 = vmul.f32 %v628, %v221
    %v646 = vmul.f32 %v629, %v221
    %v647 = vadd.f32 %v630, %v632
    %v648 = vadd.f32 %v631, %v633
    %v649 = vadd.f32 %v634, %v636
    %v650 = vadd.f32 %v635, %v637
    %v651 = vadd.f32 %v647, %v649
    %v652 = vadd.f32 %v648, %v650
    %v655 = vrot.slane %v640, 4
    %v656 = vsel %vm234, %v639, %v655
    %v658 = vadd.f32 %v638, %v656
    %v659 = vadd.f32 %v641, %v643
    %v660 = vadd.f32 %v642, %v644
    %v663 = vrot.slane %v660, 4
    %v664 = vsel %vm234, %v659, %v663
    %v666 = vadd.f32 %v658, %v664
    %668 = vst [vmem:[#allocation1] ss:$2 sm:$0xff] %v666
    %v669 = vld.sshfl [vmem:[#allocation1] sm:$0xff pattern:$0x75316420]
    %v670 = vld.sshfl [vmem:[#allocation1 + $0x8] sm:$0xff pattern:$0x75316420]
    %v673 = vadd.f32 %v651, %v669
    %v674 = vadd.f32 %v652, %v670
    %v675 = vadd.f32 %v645, %v256
    %v676 = vadd.f32 %v646, %v256
    %v677 = vadd.f32 %v673, %v675
    %v678 = vadd.f32 %v674, %v676
    %v679 = vsel %vm234, %v677, 0.0
    %v680 = vsel %vm234, %v678, 0.0
    %v681 = vadd.f32 %v679, %v680
    %682 = vadd.xlane.f32.xlu0 %v681
    %v683 = vpop.xlane.xlu0 %682
    %v684 = vrot.slane %v683, 4
    %v685 = vadd.f32 %v683, %v684
    %v686 = vrot.slane %v685, 2
    %v687 = vadd.f32 %v685, %v686
    %v688 = vrot.slane %v687, 1
    %v689 = vadd.f32 %v687, %v688
    %s690 = vtos %v689
    %v691 = vmul.f32 %v677, %v677
    %v692 = vmul.f32 %v678, %v678
    %v693 = vsel %vm234, %v691, 0.0
    %v694 = vsel %vm234, %v692, 0.0
    %v695 = vadd.f32 %v693, %v694
    %696 = vadd.xlane.f32.xlu0 %v695
    %v697 = vpop.xlane.xlu0 %696
    %v698 = vrot.slane %v697, 4
    %v699 = vadd.f32 %v697, %v698
    %v700 = vrot.slane %v699, 2
    %v701 = vadd.f32 %v699, %v700
    %v702 = vrot.slane %v701, 1
    %v703 = vadd.f32 %v701, %v702
    %s704 = vtos %v703
    %s705 = smul.f32 %s690, 0.0009765625
    %s706 = smul.f32 %s704, 0.0009765625
    %s707 = smul.f32 %s705, %s705
    %s708 = ssub.f32 %s706, %s707
    %s709 = sadd.f32 %s708, 1e-05
    %v710 = vstv %s709
    %v711 = vrsqrt.pop %v710
    %v712 = vmul.f32 %v711, %v710
    %v713 = vmul.f32 %v712, %v711
    %v714 = vmul.f32 0.5, %v713
    %v715 = vsub.f32 1.5, %v714
    %v716 = vmul.f32 %v711, %v715
    %vm717 = vweird.f32 %v710
    %vm718 = vweird.f32 %v711
    %vm719 = vmor %vm717, %vm718
    %v720 = vsel %vm719, %v711, %v716
    %s721 = vtos %v720
    %v722 = vstv %s721
    %v723 = vmul.f32 %v42, %v722
    %v724 = vstv %s705
    %v725 = vmul.f32 %v724, %v723
    %727 = vrot.lane.b32.xlu0 %v725, 1
    %v728 = vpop.permute.xlu0 %727
    %v730 = vsub.f32 %v42, %v728
    %732 = vset.pattern.permute.xlu0 10
    %733 = vperm.xlu0 %732, %v723
    %v734 = vpop.permute.xlu0 %733
    %v736 = vmul.f32 %v677, %v734
    %v737 = vmul.f32 %v678, %v734
    %739 = vset.pattern.permute.xlu0 11
    %740 = vperm.xlu0 %739, %v730
    %v741 = vpop.permute.xlu0 %740
    %v743 = vadd.f32 %v736, %v741
    %v744 = vadd.f32 %v737, %v741
    %v745 = vmax.f32 %v743, 0.0
    %v746 = vmax.f32 %v744, 0.0
    %747 = vrot.lane.b32.xlu0 %v745, 16
    %v748 = vpop.permute.xlu0 %747
    %749 = vrot.lane.b32.xlu0 %v746, 16
    %v750 = vpop.permute.xlu0 %749
    %v751 = vsel %vm70, %v748, %v750
    %v752 = vsel %vm70, %v750, %v748
    %753 = vrot.lane.b32.xlu0 %v745, 112
    %v754 = vpop.permute.xlu0 %753
    %755 = vrot.lane.b32.xlu0 %v746, 112
    %v756 = vpop.permute.xlu0 %755
    %v757 = vsel %vm100, %v754, %v756
    %v758 = vsel %vm100, %v756, %v754
    %v759 = vsel %vm70, %v757, %v752
    %v760 = vsel %vm71, %v758, %v751
    %v761 = vsel %vm72, %v752, %v757
    %v762 = vsel %vm73, %v751, %v758
    %763 = vrot.lane.b32.xlu0 %v759, 1
    %v764 = vpop.permute.xlu0 %763
    %765 = vrot.lane.b32.xlu0 %v760, 1
    %v766 = vpop.permute.xlu0 %765
    %v767 = vsel %vm111, %v764, %v766
    %v768 = vsel %vm111, %v766, %v764
    %769 = vrot.lane.b32.xlu0 %v759, 127
    %v770 = vpop.permute.xlu0 %769
    %771 = vrot.lane.b32.xlu0 %v760, 127
    %v772 = vpop.permute.xlu0 %771
    %v773 = vsel %vm118, %v770, %v772
    %v774 = vsel %vm118, %v772, %v770
    %v775 = vsel %vm74, %v773, %v768
    %v776 = vsel %vm75, %v774, %v767
    %v777 = vsel %vm76, %v768, %v773
    %v778 = vsel %vm77, %v767, %v774
    %779 = vrot.lane.b32.xlu0 %v745, 1
    %v780 = vpop.permute.xlu0 %779
    %781 = vrot.lane.b32.xlu0 %v746, 1
    %v782 = vpop.permute.xlu0 %781
    %v783 = vsel %vm111, %v780, %v782
    %v784 = vsel %vm111, %v782, %v780
    %785 = vrot.lane.b32.xlu0 %v745, 127
    %v786 = vpop.permute.xlu0 %785
    %787 = vrot.lane.b32.xlu0 %v746, 127
    %v788 = vpop.permute.xlu0 %787
    %v789 = vsel %vm118, %v786, %v788
    %v790 = vsel %vm118, %v788, %v786
    %v791 = vsel %vm74, %v789, %v784
    %v792 = vsel %vm75, %v790, %v783
    %v793 = vsel %vm76, %v784, %v789
    %v794 = vsel %vm77, %v783, %v790
    %795 = vrot.lane.b32.xlu0 %v761, 1
    %v796 = vpop.permute.xlu0 %795
    %797 = vrot.lane.b32.xlu0 %v762, 1
    %v798 = vpop.permute.xlu0 %797
    %v799 = vsel %vm111, %v796, %v798
    %v800 = vsel %vm111, %v798, %v796
    %801 = vrot.lane.b32.xlu0 %v761, 127
    %v802 = vpop.permute.xlu0 %801
    %803 = vrot.lane.b32.xlu0 %v762, 127
    %v804 = vpop.permute.xlu0 %803
    %v805 = vsel %vm118, %v802, %v804
    %v806 = vsel %vm118, %v804, %v802
    %v807 = vsel %vm74, %v805, %v800
    %v808 = vsel %vm75, %v806, %v799
    %v809 = vsel %vm76, %v800, %v805
    %v810 = vsel %vm77, %v799, %v806
    %v811 = vmul.f32 %v775, %v396
    %v812 = vmul.f32 %v776, %v396
    %v813 = vmul.f32 %v759, %v402
    %v814 = vmul.f32 %v760, %v402
    %v815 = vmul.f32 %v777, %v408
    %v816 = vmul.f32 %v778, %v408
    %v817 = vmul.f32 %v791, %v414
    %v818 = vmul.f32 %v792, %v414
    %v819 = vmul.f32 %v745, %v420
    %v820 = vmul.f32 %v746, %v420
    %v821 = vmul.f32 %v793, %v426
    %v822 = vmul.f32 %v794, %v426
    %v823 = vmul.f32 %v807, %v432
    %v824 = vmul.f32 %v808, %v432
    %v825 = vmul.f32 %v761, %v438
    %v826 = vmul.f32 %v762, %v438
    %v827 = vmul.f32 %v809, %v444
    %v828 = vmul.f32 %v810, %v444
    %v829 = vadd.f32 %v811, %v813
    %v830 = vadd.f32 %v812, %v814
    %v831 = vadd.f32 %v815, %v817
    %v832 = vadd.f32 %v816, %v818
    %v833 = vadd.f32 %v829, %v831
    %v834 = vadd.f32 %v830, %v832
    %v835 = vadd.f32 %v819, %v821
    %v836 = vadd.f32 %v820, %v822
    %v837 = vadd.f32 %v823, %v825
    %v838 = vadd.f32 %v824, %v826
    %v839 = vadd.f32 %v835, %v837
    %v840 = vadd.f32 %v836, %v838
    %v841 = vadd.f32 %v833, %v839
    %v842 = vadd.f32 %v834, %v840
    %v843 = vadd.f32 %v827, %v464
    %v844 = vadd.f32 %v828, %v464
    %v845 = vadd.f32 %v841, %v843
    %v846 = vadd.f32 %v842, %v844
    %v847 = vsel %vm234, %v845, 0.0
    %v848 = vsel %vm234, %v846, 0.0
    %v849 = vadd.f32 %v847, %v848
    %850 = vadd.xlane.f32.xlu0 %v849
    %v851 = vpop.xlane.xlu0 %850
    %v852 = vrot.slane %v851, 4
    %v853 = vadd.f32 %v851, %v852
    %v854 = vrot.slane %v853, 2
    %v855 = vadd.f32 %v853, %v854
    %v856 = vrot.slane %v855, 1
    %v857 = vadd.f32 %v855, %v856
    %s858 = vtos %v857
    %v859 = vmul.f32 %v845, %v845
    %v860 = vmul.f32 %v846, %v846
    %v861 = vsel %vm234, %v859, 0.0
    %v862 = vsel %vm234, %v860, 0.0
    %v863 = vadd.f32 %v861, %v862
    %864 = vadd.xlane.f32.xlu0 %v863
    %v865 = vpop.xlane.xlu0 %864
    %v866 = vrot.slane %v865, 4
    %v867 = vadd.f32 %v865, %v866
    %v868 = vrot.slane %v867, 2
    %v869 = vadd.f32 %v867, %v868
    %v870 = vrot.slane %v869, 1
    %v871 = vadd.f32 %v869, %v870
    %s872 = vtos %v871
    %s873 = smul.f32 %s858, 0.0009765625
    %s874 = smul.f32 %s872, 0.0009765625
    %s875 = smul.f32 %s873, %s873
    %s876 = ssub.f32 %s874, %s875
    %s877 = sadd.f32 %s876, 1e-05
    %v878 = vstv %s877
    %v879 = vrsqrt.pop %v878
    %v880 = vmul.f32 %v879, %v878
    %v881 = vmul.f32 %v880, %v879
    %v882 = vmul.f32 0.5, %v881
    %v883 = vsub.f32 1.5, %v882
    %v884 = vmul.f32 %v879, %v883
    %vm885 = vweird.f32 %v878
    %vm886 = vweird.f32 %v879
    %vm887 = vmor %vm885, %vm886
    %v888 = vsel %vm887, %v879, %v884
    %s889 = vtos %v888
    %v890 = vstv %s889
    %v891 = vmul.f32 %v42, %v890
    %v892 = vstv %s873
    %v893 = vmul.f32 %v892, %v891
    %895 = vrot.lane.b32.xlu0 %v893, 1
    %v896 = vpop.permute.xlu0 %895
    %v898 = vsub.f32 %v42, %v896
    %900 = vset.pattern.permute.xlu0 22
    %901 = vperm.xlu0 %900, %v891
    %v902 = vpop.permute.xlu0 %901
    %v904 = vmul.f32 %v845, %v902
    %v905 = vmul.f32 %v846, %v902
    %907 = vset.pattern.permute.xlu0 23
    %908 = vperm.xlu0 %907, %v898
    %v909 = vpop.permute.xlu0 %908
    %v911 = vadd.f32 %v904, %v909
    %v912 = vadd.f32 %v905, %v909
    %v915 = vrot.slane %v912, 4
    %v916 = vsel %vm234, %v911, %v915
    %v918 = vadd.f32 %v544, %v916
    %s919 = scalar_lea.vmem [#allocation7], 8
    %920 = vst [vmem:[%s919] sm:$0xff] %v918
    // Predicated region
    $region18: #{tpu_custom_call.1} parent=1 // pred_check
      _
    $region19: #{tpu_custom_call.1} parent=1 // pred_check_branch
      %922 = sbr.rel (0) target = $region21
    $region20: #{tpu_custom_call.1} parent=1 // pred_region
      %924 = vsyncadd [#allocation4], 0
      %s925 = sshll.u32 [#allocation7], 4
      %s926 = int_to_ptr.vmem [resolvable:$true] %s925
      %s927 = sshll.u32 %s2, 4
      %s928 = int_to_ptr.hbm [resolvable:$true] %s927
      %933 = dma.vmem_to_hbm [thread:$0]  %s926, 256, %s928, [#allocation4], 128, 128, 8
    $region21: #{tpu_custom_call.1} parent=1 // pred_fallthru
      _
    // Predicated region
    $region22: #{tpu_custom_call.1} parent=1 // pred_check
      _
    $region23: #{tpu_custom_call.1} parent=1 // pred_check_branch
      %935 = sbr.rel (0) target = $region25
    $region24: #{tpu_custom_call.1} parent=1 // pred_region
      %937 = dma.done [#allocation4], 256
    $region25: #{tpu_custom_call.1} parent=1 // pred_fallthru
      _
    %938 = vsyncpa [#allocation3], 1
    %939 = vsyncpa [#allocation6], 1
    %940 = vsyncpa [#allocation4], 1

</llo_original>
